<compile_context>
chip_gen: v7x
topology: tpu7x:2x2x1
jax: 0.10.0
libtpu: 0.0.40
codegen_flags: <defaults>
</compile_context>

<pallas_src>
import math

import jax
import jax.numpy as jnp
from jax.experimental import pallas as pl
from jax.experimental.pallas import tpu as pltpu

_LN_EPS = 1e-5


def _round_up(n, m):
    return ((n + m - 1) // m) * m


def _vmem_capacity_bytes():
    try:
        return int(pltpu.get_tpu_info().vmem_capacity_bytes)
    except Exception:
        return 64 * 1024 * 1024  # conservative fallback (v7x per-TC capacity)


def _make_kernel(resident_weights, d_real, d_pad):
    """Fused encoder body. The activation tile lives in the output VMEM block,
    which has a constant block index along the (inner) layer axis, so it stays
    resident across layers and is flushed to HBM once per row tile."""

    def kernel(x_ref, gamma_ref, beta_ref, w1_ref, b1_ref, w2_ref, b2_ref, out_ref):
        layer = pl.program_id(1)
        li = layer if resident_weights else 0

        # Seed the resident activation block from HBM at the first layer only.
        @pl.when(layer == 0)
        def _():
            out_ref[...] = x_ref[...]

        x = out_ref[...]                                        # (TM, Dp) f32

        # --- LayerNorm over the REAL D lanes (padded lanes hold zeros) ---
        inv_d = 1.0 / d_real
        mean = jnp.sum(x, axis=-1, keepdims=True) * inv_d
        xc = x - mean
        if d_pad != d_real:
            lane = jax.lax.broadcasted_iota(jnp.int32, (1, d_pad), 1)
            xc = jnp.where(lane < d_real, xc, 0.0)              # mask padded lanes
        var = jnp.sum(xc * xc, axis=-1, keepdims=True) * inv_d
        xn = xc * jax.lax.rsqrt(var + _LN_EPS)
        xn = xn * gamma_ref[li] + beta_ref[li]                  # (TM,Dp)*(1,Dp)+(1,Dp)

        # --- MLP: Linear(D,2D) -> GELU (tanh approx, EUP) -> Linear(2D,D) ---
        h = jnp.dot(xn.astype(jnp.bfloat16), w1_ref[li],
                    preferred_element_type=jnp.float32) + b1_ref[li]
        h = jax.nn.gelu(h, approximate=True)
        y = jnp.dot(h.astype(jnp.bfloat16), w2_ref[li],
                    preferred_element_type=jnp.float32) + b2_ref[li]

        # --- residual, carried in the output VMEM block across layers ---
        out_ref[...] = x + y

    return kernel


def mamba_encoder(x, params, *, tile_rows=None):
    """x: (B, N, D) float32. params: depth-stacked arrays from init_params."""
    B, N, D = x.shape
    R = B * N

    gamma = params["gamma"].astype(jnp.float32)          # (depth, 1, D)
    beta = params["beta"].astype(jnp.float32)            # (depth, 1, D)
    w1 = params["w1"].astype(jnp.bfloat16)               # (depth, D, H)
    b1 = params["b1"].astype(jnp.float32)                # (depth, 1, H)
    w2 = params["w2"].astype(jnp.bfloat16)               # (depth, H, D)
    b2 = params["b2"].astype(jnp.float32)                # (depth, 1, D)
    depth, _, H = w1.shape

    # Lane-dense padding: all BlockSpec last dims become multiples of 128, so
    # stores are unmasked and LN/GELU VPU work uses full vregs.
    Dp = _round_up(D, 128)
    Hp = _round_up(H, 128)

    vmem_cap = _vmem_capacity_bytes()
    budget = max(vmem_cap - 12 * 1024 * 1024, 16 * 1024 * 1024)  # Mosaic headroom

    # Keep ALL layers' weights VMEM-resident when they comfortably fit: removes
    # the (R/tm) * depth weight re-streaming of the (rows, depth) grid ordering.
    w_bytes_all = depth * (2 * Dp * Hp * 2 + (3 * Dp + Hp) * 4)
    resident = w_bytes_all <= budget // 3

    def vmem_estimate(tm):
        act = 2 * tm * Dp * 4 + 2 * tm * Dp * 4           # x + out blocks (double-buffered)
        inter = 2 * tm * Hp * 4 + tm * (Dp + Hp) * 2      # h/GELU f32 + bf16 matmul operands
        if resident:
            w = w_bytes_all
        else:
            w = 2 * (2 * Dp * Hp * 2 + (3 * Dp + Hp) * 4)  # per-layer weights, 2 buffers
        return act + inter + w

    # Row tile: per-generation default, multiple of 8 sublanes, shrunk to fit.
    if tile_rows is None:
        tile_rows = 512 if vmem_cap >= 96 * 1024 * 1024 else 256
    tm = min(max(8, _round_up(tile_rows, 8)), _round_up(R, 8))
    while vmem_estimate(tm) > budget and tm > 8:
        tm = max(8, _round_up(tm // 2, 8))
    # TODO(synk): H-chunking (3rd grid axis) for D so large that even a single
    # layer's double-buffered weights exceed `budget` (e.g. D >= 2048 on v7x).

    Rp = _round_up(R, tm)
    x2d = x.reshape(R, D).astype(jnp.float32)
    if Rp != R or Dp != D:
        x2d = jnp.pad(x2d, ((0, Rp - R), (0, Dp - D)))

    def pad3(a, d1, d2):
        return jnp.pad(a, ((0, 0), (0, d1 - a.shape[1]), (0, d2 - a.shape[2])))

    gamma = pad3(gamma, 1, Dp)   # padded gamma/beta lanes are 0 -> padded lanes stay 0
    beta = pad3(beta, 1, Dp)
    w1 = pad3(w1, Dp, Hp)
    b1 = pad3(b1, 1, Hp)
    w2 = pad3(w2, Hp, Dp)
    b2 = pad3(b2, 1, Dp)

    grid = (Rp // tm, depth)

    if resident:
        w_idx = lambda i, l: (0, 0, 0)     # constant -> fetched once, VMEM-resident
        wd = depth
    else:
        w_idx = lambda i, l: (l, 0, 0)     # streamed / double-buffered per layer
        wd = 1

    n_row_tiles = Rp // tm
    weight_hbm = w_bytes_all * (1 if resident else n_row_tiles)
    cost = pl.CostEstimate(
        flops=int(4 * depth * Rp * Dp * Hp),
        transcendentals=int(depth * Rp * Hp),
        bytes_accessed=int(2 * Rp * Dp * 4 + weight_hbm))

    vmem_limit = int(min(budget, max(2 * vmem_estimate(tm), 16 * 1024 * 1024)))

    out = pl.pallas_call(
        _make_kernel(resident, D, Dp),
        out_shape=jax.ShapeDtypeStruct((Rp, Dp), jnp.float32),
        grid_spec=pltpu.PrefetchScalarGridSpec(
            num_scalar_prefetch=0,
            grid=grid,
            in_specs=[
                pl.BlockSpec((tm, Dp), lambda i, l: (i, 0)),   # x rows
                pl.BlockSpec((wd, 1, Dp), w_idx),              # gamma
                pl.BlockSpec((wd, 1, Dp), w_idx),              # beta
                pl.BlockSpec((wd, Dp, Hp), w_idx),             # W1
                pl.BlockSpec((wd, 1, Hp), w_idx),              # b1
                pl.BlockSpec((wd, Hp, Dp), w_idx),             # W2
                pl.BlockSpec((wd, 1, Dp), w_idx),              # b2
            ],
            out_specs=pl.BlockSpec((tm, Dp), lambda i, l: (i, 0)),
        ),
        compiler_params=pltpu.CompilerParams(
            dimension_semantics=("parallel", "arbitrary"),
            vmem_limit_bytes=vmem_limit),
        cost_estimate=cost,
        input_output_aliases={0: 0},   # output reuses the padded x buffer
    )(x2d, gamma, beta, w1, b1, w2, b2)

    return out[:R, :D].reshape(B, N, D)


def init_params(key, dim, depth):
    """Depth-stacked parameters (f32; kernel casts weights to bf16)."""
    H = 2 * dim
    bound1 = 1.0 / math.sqrt(dim)
    bound2 = 1.0 / math.sqrt(H)
    keys = jax.random.split(key, 4 * depth)
    w1 = jnp.stack([jax.random.uniform(keys[4 * l + 0], (dim, H), jnp.float32,
                                       -bound1, bound1) for l in range(depth)])
    b1 = jnp.stack([jax.random.uniform(keys[4 * l + 1], (1, H), jnp.float32,
                                       -bound1, bound1) for l in range(depth)])
    w2 = jnp.stack([jax.random.uniform(keys[4 * l + 2], (H, dim), jnp.float32,
                                       -bound2, bound2) for l in range(depth)])
    b2 = jnp.stack([jax.random.uniform(keys[4 * l + 3], (1, dim), jnp.float32,
                                       -bound2, bound2) for l in range(depth)])
    return {
        "gamma": jnp.ones((depth, 1, dim), jnp.float32),
        "beta": jnp.zeros((depth, 1, dim), jnp.float32),
        "w1": w1, "b1": b1, "w2": w2, "b2": b2,
    }


def _reference(x, params):
    """Pure-JAX f32 reference mirroring the PyTorch forward (exact-erf GELU)."""
    y = x.astype(jnp.float32)
    depth = params["w1"].shape[0]
    for l in range(depth):
        mean = jnp.mean(y, axis=-1, keepdims=True)
        var = jnp.mean((y - mean) ** 2, axis=-1, keepdims=True)
        yn = (y - mean) / jnp.sqrt(var + _LN_EPS)
        yn = yn * params["gamma"][l, 0] + params["beta"][l, 0]
        h = yn @ params["w1"][l] + params["b1"][l, 0]
        h = jax.nn.gelu(h, approximate=False)
        y = y + (h @ params["w2"][l] + params["b2"][l, 0])
    return y


if __name__ == "__main__":
    dim, depth = 32, 2
    batch, seq = 2, 8

    key = jax.random.PRNGKey(0)
    kx, kp = jax.random.split(key)
    x = jax.random.normal(kx, (batch, seq, dim), jnp.float32)
    params = init_params(kp, dim, depth)

    out = mamba_encoder(x, params)
    out = jax.block_until_ready(out)

    ref = _reference(x, params)
    assert out.shape == (batch, seq, dim)
    # bf16 MXU operands (f32 accumulation) + tanh-approx GELU vs the exact-erf
    # f32 reference: loosened tolerance per the perf review's correctness note.
    assert jnp.allclose(out, ref, atol=2e-2, rtol=2e-2), "mismatch vs reference"

    print("KERNEL_OK")
</pallas_src>

<mosaic_0001>
module attributes {stable_mosaic.version = 11 : i64} {
  func.func @kernel(%arg0: i32, %arg1: i32, %arg2: memref<16x128xf32, #tpu.memory_space<vmem>>, %arg3: memref<2x1x128xf32, #tpu.memory_space<vmem>>, %arg4: memref<2x1x128xf32, #tpu.memory_space<vmem>>, %arg5: memref<2x128x128xbf16, #tpu.memory_space<vmem>>, %arg6: memref<2x1x128xf32, #tpu.memory_space<vmem>>, %arg7: memref<2x128x128xbf16, #tpu.memory_space<vmem>>, %arg8: memref<2x1x128xf32, #tpu.memory_space<vmem>>, %arg9: memref<16x128xf32, #tpu.memory_space<vmem>>) attributes {dimension_semantics = [#tpu.dimension_semantics<parallel>, #tpu.dimension_semantics<arbitrary>], iteration_bounds = array<i64: 1, 2>, scalar_prefetch = 0 : i64, scratch_operands = 0 : i64, tpu.core_type = #tpu.core_type<tc>, window_params = [{transform_indices = @transform_0, window_bounds = array<i64: 16, 128>}, {pipeline_mode = #tpu.pipeline_mode<synchronous>, transform_indices = @transform_1, window_bounds = array<i64: 2, 1, 128>}, {pipeline_mode = #tpu.pipeline_mode<synchronous>, transform_indices = @transform_2, window_bounds = array<i64: 2, 1, 128>}, {pipeline_mode = #tpu.pipeline_mode<synchronous>, transform_indices = @transform_3, window_bounds = array<i64: 2, 128, 128>}, {pipeline_mode = #tpu.pipeline_mode<synchronous>, transform_indices = @transform_4, window_bounds = array<i64: 2, 1, 128>}, {pipeline_mode = #tpu.pipeline_mode<synchronous>, transform_indices = @transform_5, window_bounds = array<i64: 2, 128, 128>}, {pipeline_mode = #tpu.pipeline_mode<synchronous>, transform_indices = @transform_6, window_bounds = array<i64: 2, 1, 128>}, {transform_indices = @transform_7, window_bounds = array<i64: 16, 128>}]} {
    %c0_i32 = arith.constant 0 : i32
    %0 = arith.cmpi eq, %arg1, %c0_i32 : i32
    %1 = arith.extui %0 : i1 to i32
    %c0_i32_0 = arith.constant 0 : i32
    %2 = arith.cmpi ne, %1, %c0_i32_0 : i32
    scf.if %2 {
      %c0_27 = arith.constant 0 : index
      %c0_28 = arith.constant 0 : index
      %72 = vector.load %arg2[%c0_27, %c0_28] : memref<16x128xf32, #tpu.memory_space<vmem>>, vector<16x128xf32>
      %c0_29 = arith.constant 0 : index
      %c0_30 = arith.constant 0 : index
      %73 = vector.load %arg9[%c0_29, %c0_30] : memref<16x128xf32, #tpu.memory_space<vmem>>, vector<16x128xf32>
      tpu.vector_store %arg9[%c0_29, %c0_30], %72 {strides = array<i32>} : memref<16x128xf32, #tpu.memory_space<vmem>>, vector<16x128xf32>,
    } else {
    }
    %c0 = arith.constant 0 : index
    %c0_1 = arith.constant 0 : index
    %3 = vector.load %arg9[%c0, %c0_1] : memref<16x128xf32, #tpu.memory_space<vmem>>, vector<16x128xf32>
    %cst = arith.constant dense<0.000000e+00> : vector<16xf32>
    %4 = vector.multi_reduction <add>, %3, %cst [1] : vector<16x128xf32> to vector<16xf32>
    %5 = vector.shape_cast %4 : vector<16xf32> to vector<16x1xf32>
    %cst_2 = arith.constant 3.125000e-02 : f32
    %6 = vector.broadcast %cst_2 : f32 to vector<16x1xf32>
    %7 = arith.mulf %5, %6 : vector<16x1xf32>
    %8 = vector.broadcast %7 : vector<16x1xf32> to vector<16x128xf32>
    %9 = arith.subf %3, %8 : vector<16x128xf32>
    %10 = tpu.iota {dimensions = array<i32: 1>} : vector<1x128xi32>
    %c32_i32 = arith.constant 32 : i32
    %11 = vector.broadcast %c32_i32 : i32 to vector<1x128xi32>
    %12 = arith.cmpi slt, %10, %11 : vector<1x128xi32>
    %cst_3 = arith.constant 0.000000e+00 : f32
    %13 = vector.shape_cast %12 : vector<1x128xi1> to vector<1x128xi1>
    %14 = vector.broadcast %13 : vector<1x128xi1> to vector<16x128xi1>
    %15 = vector.broadcast %cst_3 : f32 to vector<16x128xf32>
    %16 = arith.select %14, %9, %15 : vector<16x128xi1>, vector<16x128xf32>
    %17 = arith.mulf %16, %16 : vector<16x128xf32>
    %cst_4 = arith.constant dense<0.000000e+00> : vector<16xf32>
    %18 = vector.multi_reduction <add>, %17, %cst_4 [1] : vector<16x128xf32> to vector<16xf32>
    %19 = vector.shape_cast %18 : vector<16xf32> to vector<16x1xf32>
    %cst_5 = arith.constant 3.125000e-02 : f32
    %20 = vector.broadcast %cst_5 : f32 to vector<16x1xf32>
    %21 = arith.mulf %19, %20 : vector<16x1xf32>
    %cst_6 = arith.constant 9.99999974E-6 : f32
    %22 = vector.broadcast %cst_6 : f32 to vector<16x1xf32>
    %23 = arith.addf %21, %22 : vector<16x1xf32>
    %24 = math.rsqrt %23 : vector<16x1xf32>
    %25 = vector.broadcast %24 : vector<16x1xf32> to vector<16x128xf32>
    %26 = arith.mulf %16, %25 : vector<16x128xf32>
    %27 = arith.index_cast %arg1 : i32 to index
    %c0_7 = arith.constant 0 : index
    %c0_8 = arith.constant 0 : index
    %28 = vector.load %arg3[%27, %c0_7, %c0_8] : memref<2x1x128xf32, #tpu.memory_space<vmem>>, vector<1x1x128xf32>
    %29 = vector.shape_cast %28 : vector<1x1x128xf32> to vector<1x128xf32>
    %30 = vector.broadcast %29 : vector<1x128xf32> to vector<16x128xf32>
    %31 = arith.mulf %26, %30 : vector<16x128xf32>
    %32 = arith.index_cast %arg1 : i32 to index
    %c0_9 = arith.constant 0 : index
    %c0_10 = arith.constant 0 : index
    %33 = vector.load %arg4[%32, %c0_9, %c0_10] : memref<2x1x128xf32, #tpu.memory_space<vmem>>, vector<1x1x128xf32>
    %34 = vector.shape_cast %33 : vector<1x1x128xf32> to vector<1x128xf32>
    %35 = vector.broadcast %34 : vector<1x128xf32> to vector<16x128xf32>
    %36 = arith.addf %31, %35 : vector<16x128xf32>
    %37 = arith.truncf %36 : vector<16x128xf32> to vector<16x128xbf16>
    %38 = arith.index_cast %arg1 : i32 to index
    %c0_11 = arith.constant 0 : index
    %c0_12 = arith.constant 0 : index
    %39 = vector.load %arg5[%38, %c0_11, %c0_12] : memref<2x128x128xbf16, #tpu.memory_space<vmem>>, vector<1x128x128xbf16>
    %40 = vector.shape_cast %39 : vector<1x128x128xbf16> to vector<128x128xbf16>
    %cst_13 = arith.constant dense<0.000000e+00> : vector<16x128xf32>
    %41 = tpu.matmul %37, %40, %cst_13 {dimension_numbers = #tpu.dot_dimension_numbers<[1], [0], [0], [1], [0, 0, 1, 1], [], []>} : vector<16x128xbf16>, vector<128x128xbf16>, vector<16x128xf32> -> vector<16x128xf32>
    %42 = arith.index_cast %arg1 : i32 to index
    %c0_14 = arith.constant 0 : index
    %c0_15 = arith.constant 0 : index
    %43 = vector.load %arg6[%42, %c0_14, %c0_15] : memref<2x1x128xf32, #tpu.memory_space<vmem>>, vector<1x1x128xf32>
    %44 = vector.shape_cast %43 : vector<1x1x128xf32> to vector<1x128xf32>
    %45 = vector.broadcast %44 : vector<1x128xf32> to vector<16x128xf32>
    %46 = arith.addf %41, %45 : vector<16x128xf32>
    %47 = arith.mulf %46, %46 : vector<16x128xf32>
    %48 = arith.mulf %46, %47 : vector<16x128xf32>
    %cst_16 = arith.constant 4.471500e-02 : f32
    %49 = vector.broadcast %cst_16 : f32 to vector<16x128xf32>
    %50 = arith.mulf %49, %48 : vector<16x128xf32>
    %51 = arith.addf %46, %50 : vector<16x128xf32>
    %cst_17 = arith.constant 0.797884583 : f32
    %52 = vector.broadcast %cst_17 : f32 to vector<16x128xf32>
    %53 = arith.mulf %52, %51 : vector<16x128xf32>
    %54 = math.tanh %53 : vector<16x128xf32>
    %cst_18 = arith.constant 1.000000e+00 : f32
    %55 = vector.broadcast %cst_18 : f32 to vector<16x128xf32>
    %56 = arith.addf %55, %54 : vector<16x128xf32>
    %cst_19 = arith.constant 5.000000e-01 : f32
    %57 = vector.broadcast %cst_19 : f32 to vector<16x128xf32>
    %58 = arith.mulf %57, %56 : vector<16x128xf32>
    %59 = arith.mulf %46, %58 : vector<16x128xf32>
    %60 = arith.truncf %59 : vector<16x128xf32> to vector<16x128xbf16>
    %61 = arith.index_cast %arg1 : i32 to index
    %c0_20 = arith.constant 0 : index
    %c0_21 = arith.constant 0 : index
    %62 = vector.load %arg7[%61, %c0_20, %c0_21] : memref<2x128x128xbf16, #tpu.memory_space<vmem>>, vector<1x128x128xbf16>
    %63 = vector.shape_cast %62 : vector<1x128x128xbf16> to vector<128x128xbf16>
    %cst_22 = arith.constant dense<0.000000e+00> : vector<16x128xf32>
    %64 = tpu.matmul %60, %63, %cst_22 {dimension_numbers = #tpu.dot_dimension_numbers<[1], [0], [0], [1], [0, 0, 1, 1], [], []>} : vector<16x128xbf16>, vector<128x128xbf16>, vector<16x128xf32> -> vector<16x128xf32>
    %65 = arith.index_cast %arg1 : i32 to index
    %c0_23 = arith.constant 0 : index
    %c0_24 = arith.constant 0 : index
    %66 = vector.load %arg8[%65, %c0_23, %c0_24] : memref<2x1x128xf32, #tpu.memory_space<vmem>>, vector<1x1x128xf32>
    %67 = vector.shape_cast %66 : vector<1x1x128xf32> to vector<1x128xf32>
    %68 = vector.broadcast %67 : vector<1x128xf32> to vector<16x128xf32>
    %69 = arith.addf %64, %68 : vector<16x128xf32>
    %70 = arith.addf %3, %69 : vector<16x128xf32>
    %c0_25 = arith.constant 0 : index
    %c0_26 = arith.constant 0 : index
    %71 = vector.load %arg9[%c0_25, %c0_26] : memref<16x128xf32, #tpu.memory_space<vmem>>, vector<16x128xf32>
    tpu.vector_store %arg9[%c0_25, %c0_26], %70 {strides = array<i32>} : memref<16x128xf32, #tpu.memory_space<vmem>>, vector<16x128xf32>,
    return
  }
  func.func @transform_0(%arg0: i32, %arg1: i32) -> (i32, i32) {
    %c0_i32 = arith.constant 0 : i32
    %c0_i32_0 = arith.constant 0 : i32
    return %arg0, %c0_i32 : i32, i32
  }
  func.func @transform_1(%arg0: i32, %arg1: i32) -> (i32, i32, i32) {
    %c0_i32 = arith.constant 0 : i32
    %c0_i32_0 = arith.constant 0 : i32
    %c0_i32_1 = arith.constant 0 : i32
    %c0_i32_2 = arith.constant 0 : i32
    return %c0_i32, %c0_i32_0, %c0_i32_1 : i32, i32, i32
  }
  func.func @transform_2(%arg0: i32, %arg1: i32) -> (i32, i32, i32) {
    %c0_i32 = arith.constant 0 : i32
    %c0_i32_0 = arith.constant 0 : i32
    %c0_i32_1 = arith.constant 0 : i32
    %c0_i32_2 = arith.constant 0 : i32
    return %c0_i32, %c0_i32_0, %c0_i32_1 : i32, i32, i32
  }
  func.func @transform_3(%arg0: i32, %arg1: i32) -> (i32, i32, i32) {
    %c0_i32 = arith.constant 0 : i32
    %c0_i32_0 = arith.constant 0 : i32
    %c0_i32_1 = arith.constant 0 : i32
    %c0_i32_2 = arith.constant 0 : i32
    return %c0_i32, %c0_i32_0, %c0_i32_1 : i32, i32, i32
  }
  func.func @transform_4(%arg0: i32, %arg1: i32) -> (i32, i32, i32) {
    %c0_i32 = arith.constant 0 : i32
    %c0_i32_0 = arith.constant 0 : i32
    %c0_i32_1 = arith.constant 0 : i32
    %c0_i32_2 = arith.constant 0 : i32
    return %c0_i32, %c0_i32_0, %c0_i32_1 : i32, i32, i32
  }
  func.func @transform_5(%arg0: i32, %arg1: i32) -> (i32, i32, i32) {
    %c0_i32 = arith.constant 0 : i32
    %c0_i32_0 = arith.constant 0 : i32
    %c0_i32_1 = arith.constant 0 : i32
    %c0_i32_2 = arith.constant 0 : i32
    return %c0_i32, %c0_i32_0, %c0_i32_1 : i32, i32, i32
  }
  func.func @transform_6(%arg0: i32, %arg1: i32) -> (i32, i32, i32) {
    %c0_i32 = arith.constant 0 : i32
    %c0_i32_0 = arith.constant 0 : i32
    %c0_i32_1 = arith.constant 0 : i32
    %c0_i32_2 = arith.constant 0 : i32
    return %c0_i32, %c0_i32_0, %c0_i32_1 : i32, i32, i32
  }
  func.func @transform_7(%arg0: i32, %arg1: i32) -> (i32, i32) {
    %c0_i32 = arith.constant 0 : i32
    %c0_i32_0 = arith.constant 0 : i32
    return %arg0, %c0_i32 : i32, i32
  }
}

</mosaic_0001>

<llo_original>
// kernel: tpu_custom_call.1
$region0: #{tpu_custom_call.1}
  #allocation0 [shape = 'u32[]', space=smem, size = 0x4, offset = 0x4, fixed_abs, tag = 'smem constant byte address 0x4 - core index']
  #allocation1 [shape = 'u32[144,128]{1,0:T(1,128)}', space=vmem, size = 0x12000, scoped, tag = 'internal scratch']
  %s0 = inlined_call_operand.hbm [shape: f32[16,128], index: 0, kind: input, shape index: {}, may-alias: {0,7}]
  %s1 = inlined_call_operand.vmem [shape: f32[2,1,128], index: 1, kind: input, shape index: {}]
  %s2 = inlined_call_operand.vmem [shape: f32[2,1,128], index: 2, kind: input, shape index: {}]
  %s3 = inlined_call_operand.hbm [shape: bf16[2,128,128], index: 3, kind: input, shape index: {}]
  %s4 = inlined_call_operand.vmem [shape: f32[2,1,128], index: 4, kind: input, shape index: {}]
  %s5 = inlined_call_operand.hbm [shape: bf16[2,128,128], index: 5, kind: input, shape index: {}]
  %s6 = inlined_call_operand.vmem [shape: f32[2,1,128], index: 6, kind: input, shape index: {}]
  %s7 = inlined_call_operand.hbm [shape: f32[16,128], index: 7, kind: output, shape index: {}, may-alias: {0,7}]
  %s8 = sld [smem:[#allocation0]]
  $region77: #{tpu_custom_call.1} parent=0
    _
  %s10 = ssub.s32 1, %s8
  %s11 = scalar_select 0, %s10, %s8
  $region1: #{tpu_custom_call.1} parent=0
    #allocation2 [shape = 'u8[8192]{0}', space=vmem, size = 0x2000, scoped, tag = 'input window, operand 0, single buffered']
    #allocation3 [shape = 's32[2]{0}', space=sflag, size = 0x8, scoped, tag = 'scoped memory for tpu_custom_call.1']
    #allocation4 [shape = 's32[2]{0}', space=sflag, size = 0x8, scoped, tag = 'scoped memory for tpu_custom_call.1']
    #allocation5 [shape = 'u8[65536]{0}', space=vmem, size = 0x10000, scoped, tag = 'input window, operand 3, single buffered']
    #allocation6 [shape = 's32[1]{0}', space=sflag, size = 0x4, scoped, tag = 'scoped memory for tpu_custom_call.1']
    #allocation7 [shape = 'u8[65536]{0}', space=vmem, size = 0x10000, scoped, tag = 'input window, operand 5, single buffered']
    #allocation8 [shape = 'u8[8192]{0}', space=vmem, size = 0x2000, scoped, tag = 'output window, operand 0, single buffered']
    %12 = vsyncpa [#allocation3], 0
    %13 = vsyncpa [#allocation6], 0
    %14 = vsyncpa [#allocation4], 0
    loop: start=0, step=1, limit=4
    $region2: #{tpu_custom_call.1} parent=1 // loop_pre_header
      _
    $region3: #{tpu_custom_call.1} parent=1 // loop_header
      %s16 = sphi 0, %s20
      %p17 = scmp.ge.s32.totalorder %s16, 4
      %s23 = sphi 0, %s35
      %s24 = sphi 0, %s31
      %s25 = sphi 0, %s23
      %s26 = sphi 0, %s24
      %s27 = sphi 0, %s25
      %s28 = sphi 0, %s26
      %s38 = sphi 0, %s40
      %s41 = sphi 0, %s38
      %s42 = sphi 0, %s41
      %s58 = sphi 0, %s42
      %s62 = sphi 0, %s62
      %s64 = sphi 0, %s62
      %s65 = sphi 0, %s64
      %s79 = sphi 0, %s65
      %s83 = sphi 0, %s83
      %s85 = sphi 0, %s83
      %s86 = sphi 0, %s85
      %s100 = sphi 0, %s86
      %s104 = sphi 0, %s104
      %s106 = sphi 0, %s104
      %s107 = sphi 0, %s106
      %s121 = sphi 0, %s107
      %s125 = sphi 0, %s125
      %s127 = sphi 0, %s125
      %s128 = sphi 0, %s127
      %s142 = sphi 0, %s128
      %s146 = sphi 0, %s146
      %s148 = sphi 0, %s146
      %s149 = sphi 0, %s148
      %s163 = sphi 0, %s149
      %s167 = sphi 0, %s167
      %s169 = sphi 0, %s167
      %s170 = sphi 0, %s169
      %s184 = sphi 0, %s170
      %s190 = sphi 0, %s192
      %s193 = sphi 0, %s190
      %s194 = sphi 0, %s193
      %s210 = sphi 0, %s194
    $region4: #{tpu_custom_call.1} parent=1 // loop_header_branch
      %19 = sbr.rel (%p17) target = $region8
    $region5: #{tpu_custom_call.1} parent=1 // loop_body
      %s21 = ssub.s32 %s16, 1
      %s22 = ssub.s32 %s16, 2
      %s29 = sadd.s32 1, %s24
      %p30 = scmp.ge.s32.totalorder %s29, 2
      %s31 = scalar_select %p30, 0, %s29
      %s32 = sadd.s32 1, %s23
      %s33 = scalar_select %p30, %s32, %s23
      %p34 = scmp.ge.s32.totalorder %s33, 1
      %s35 = scalar_select %p34, 0, %s33
      %s36 = ssub.s32 %s23, %s35
      %p37 = scmp.eq.s32.totalorder %s36, 0
      %s39 = sadd.s32 %s38, 1
      %s40 = scalar_select %p37, %s38, %s39
      %p43 = pneg %p37
      %p44 = scmp.eq.s32.totalorder %s16, 1
      %p45 = por %p43, %p44
      %p46 = scmp.ne.s32.totalorder %s38, %s41
      %p47 = scmp.eq.s32.totalorder %s16, 0
      %p48 = por %p46, %p47
      %p49 = scmp.ne.s32.totalorder %s38, %s41
      %p50 = scmp.eq.s32.totalorder %s21, 1
      %p51 = por %p49, %p50
      %p52 = scmp.ne.s32.totalorder %s41, %s42
      %p53 = scmp.eq.s32.totalorder %s21, 0
      %p54 = por %p52, %p53
      %p55 = scmp.ne.s32.totalorder %s41, %s42
      %p56 = scmp.eq.s32.totalorder %s22, 1
      %p57 = por %p55, %p56
      %p59 = scmp.ne.s32.totalorder %s42, %s58
      %p60 = scmp.eq.s32.totalorder %s22, 0
      %p61 = por %p59, %p60
      %s63 = sadd.s32 %s62, 1
      %p66 = scmp.eq.s32.totalorder %s16, 1
      %p67 = scmp.ne.s32.totalorder %s62, %s64
      %p68 = scmp.eq.s32.totalorder %s16, 0
      %p69 = por %p67, %p68
      %p70 = scmp.ne.s32.totalorder %s62, %s64
      %p71 = scmp.eq.s32.totalorder %s21, 1
      %p72 = por %p70, %p71
      %p73 = scmp.ne.s32.totalorder %s64, %s65
      %p74 = scmp.eq.s32.totalorder %s21, 0
      %p75 = por %p73, %p74
      %p76 = scmp.ne.s32.totalorder %s64, %s65
      %p77 = scmp.eq.s32.totalorder %s22, 1
      %p78 = por %p76, %p77
      %p80 = scmp.ne.s32.totalorder %s65, %s79
      %p81 = scmp.eq.s32.totalorder %s22, 0
      %p82 = por %p80, %p81
      %s84 = sadd.s32 %s83, 1
      %p87 = scmp.eq.s32.totalorder %s16, 1
      %p88 = scmp.ne.s32.totalorder %s83, %s85
      %p89 = scmp.eq.s32.totalorder %s16, 0
      %p90 = por %p88, %p89
      %p91 = scmp.ne.s32.totalorder %s83, %s85
      %p92 = scmp.eq.s32.totalorder %s21, 1
      %p93 = por %p91, %p92
      %p94 = scmp.ne.s32.totalorder %s85, %s86
      %p95 = scmp.eq.s32.totalorder %s21, 0
      %p96 = por %p94, %p95
      %p97 = scmp.ne.s32.totalorder %s85, %s86
      %p98 = scmp.eq.s32.totalorder %s22, 1
      %p99 = por %p97, %p98
      %p101 = scmp.ne.s32.totalorder %s86, %s100
      %p102 = scmp.eq.s32.totalorder %s22, 0
      %p103 = por %p101, %p102
      %s105 = sadd.s32 %s104, 1
      %p108 = scmp.eq.s32.totalorder %s16, 1
      %p109 = scmp.ne.s32.totalorder %s104, %s106
      %p110 = scmp.eq.s32.totalorder %s16, 0
      %p111 = por %p109, %p110
      %p112 = scmp.ne.s32.totalorder %s104, %s106
      %p113 = scmp.eq.s32.totalorder %s21, 1
      %p114 = por %p112, %p113
      %p115 = scmp.ne.s32.totalorder %s106, %s107
      %p116 = scmp.eq.s32.totalorder %s21, 0
      %p117 = por %p115, %p116
      %p118 = scmp.ne.s32.totalorder %s106, %s107
      %p119 = scmp.eq.s32.totalorder %s22, 1
      %p120 = por %p118, %p119
      %p122 = scmp.ne.s32.totalorder %s107, %s121
      %p123 = scmp.eq.s32.totalorder %s22, 0
      %p124 = por %p122, %p123
      %s126 = sadd.s32 %s125, 1
      %p129 = scmp.eq.s32.totalorder %s16, 1
      %p130 = scmp.ne.s32.totalorder %s125, %s127
      %p131 = scmp.eq.s32.totalorder %s16, 0
      %p132 = por %p130, %p131
      %p133 = scmp.ne.s32.totalorder %s125, %s127
      %p134 = scmp.eq.s32.totalorder %s21, 1
      %p135 = por %p133, %p134
      %p136 = scmp.ne.s32.totalorder %s127, %s128
      %p137 = scmp.eq.s32.totalorder %s21, 0
      %p138 = por %p136, %p137
      %p139 = scmp.ne.s32.totalorder %s127, %s128
      %p140 = scmp.eq.s32.totalorder %s22, 1
      %p141 = por %p139, %p140
      %p143 = scmp.ne.s32.totalorder %s128, %s142
      %p144 = scmp.eq.s32.totalorder %s22, 0
      %p145 = por %p143, %p144
      %s147 = sadd.s32 %s146, 1
      %p150 = scmp.eq.s32.totalorder %s16, 1
      %p151 = scmp.ne.s32.totalorder %s146, %s148
      %p152 = scmp.eq.s32.totalorder %s16, 0
      %p153 = por %p151, %p152
      %p154 = scmp.ne.s32.totalorder %s146, %s148
      %p155 = scmp.eq.s32.totalorder %s21, 1
      %p156 = por %p154, %p155
      %p157 = scmp.ne.s32.totalorder %s148, %s149
      %p158 = scmp.eq.s32.totalorder %s21, 0
      %p159 = por %p157, %p158
      %p160 = scmp.ne.s32.totalorder %s148, %s149
      %p161 = scmp.eq.s32.totalorder %s22, 1
      %p162 = por %p160, %p161
      %p164 = scmp.ne.s32.totalorder %s149, %s163
      %p165 = scmp.eq.s32.totalorder %s22, 0
      %p166 = por %p164, %p165
      %s168 = sadd.s32 %s167, 1
      %p171 = scmp.eq.s32.totalorder %s16, 1
      %p172 = scmp.ne.s32.totalorder %s167, %s169
      %p173 = scmp.eq.s32.totalorder %s16, 0
      %p174 = por %p172, %p173
      %p175 = scmp.ne.s32.totalorder %s167, %s169
      %p176 = scmp.eq.s32.totalorder %s21, 1
      %p177 = por %p175, %p176
      %p178 = scmp.ne.s32.totalorder %s169, %s170
      %p179 = scmp.eq.s32.totalorder %s21, 0
      %p180 = por %p178, %p179
      %p181 = scmp.ne.s32.totalorder %s169, %s170
      %p182 = scmp.eq.s32.totalorder %s22, 1
      %p183 = por %p181, %p182
      %p185 = scmp.ne.s32.totalorder %s170, %s184
      %p186 = scmp.eq.s32.totalorder %s22, 0
      %p187 = por %p185, %p186
      %s188 = ssub.s32 %s23, %s35
      %p189 = scmp.eq.s32.totalorder %s188, 0
      %s191 = sadd.s32 %s190, 1
      %s192 = scalar_select %p189, %s190, %s191
      %p195 = pneg %p189
      %p196 = scmp.eq.s32.totalorder %s16, 1
      %p197 = por %p195, %p196
      %p198 = scmp.ne.s32.totalorder %s190, %s193
      %p199 = scmp.eq.s32.totalorder %s16, 0
      %p200 = por %p198, %p199
      %p201 = scmp.ne.s32.totalorder %s190, %s193
      %p202 = scmp.eq.s32.totalorder %s21, 1
      %p203 = por %p201, %p202
      %p204 = scmp.ne.s32.totalorder %s193, %s194
      %p205 = scmp.eq.s32.totalorder %s21, 0
      %p206 = por %p204, %p205
      %p207 = scmp.ne.s32.totalorder %s193, %s194
      %p208 = scmp.eq.s32.totalorder %s22, 1
      %p209 = por %p207, %p208
      %p211 = scmp.ne.s32.totalorder %s194, %s210
      %p212 = scmp.eq.s32.totalorder %s22, 0
      %p213 = por %p211, %p212
      %p214 = scmp.le.s32.totalorder 1, %s16
      %p215 = scmp.lt.s32.totalorder %s16, 3
      %p216 = pnand %p214, %p215
      %p217 = pneg %p216
      // Predicated region
      $region9: #{tpu_custom_call.1} parent=5 // pred_check
        _
      $region10: #{tpu_custom_call.1} parent=5 // pred_check_branch
        %219 = sbr.rel (%p216) target = $region12
      $region11: #{tpu_custom_call.1} parent=5 // pred_region
        %s220 = ssub.s32 %s16, 1
        // Predicated region
        $region13: #{tpu_custom_call.1} parent=11 // pred_check
          %p221 = pneg %p54
        $region14: #{tpu_custom_call.1} parent=11 // pred_check_branch
          %223 = sbr.rel (%p221) target = $region16
        $region15: #{tpu_custom_call.1} parent=11 // pred_region
          %s224 = smul.u32 2, %s25
          %s226 = ssub.s32 256, 256
          %227 = vsyncadd [#allocation3], %s226
          %s228 = smul.addr %s224, 128
          %s229 = scalar_lea.hbm %s0, %s228
          %s230 = sshll.u32 [#allocation2], 4
          %s231 = int_to_ptr.vmem [resolvable:$true] %s230
          %236 = dma.hbm_to_vmem [thread:$0]  %s229, 256, %s231, [#allocation3], 128, 128, 8
        $region16: #{tpu_custom_call.1} parent=11 // pred_fallthru
          _
        // Predicated region
        $region17: #{tpu_custom_call.1} parent=11 // pred_check
          %p237 = pneg %p75
        $region18: #{tpu_custom_call.1} parent=11 // pred_check_branch
          %239 = sbr.rel (%p237) target = $region20
        $region19: #{tpu_custom_call.1} parent=11 // pred_region
          _
        $region20: #{tpu_custom_call.1} parent=11 // pred_fallthru
          _
        // Predicated region
        $region21: #{tpu_custom_call.1} parent=11 // pred_check
          %p240 = pneg %p96
        $region22: #{tpu_custom_call.1} parent=11 // pred_check_branch
          %242 = sbr.rel (%p240) target = $region24
        $region23: #{tpu_custom_call.1} parent=11 // pred_region
          _
        $region24: #{tpu_custom_call.1} parent=11 // pred_fallthru
          _
        // Predicated region
        $region25: #{tpu_custom_call.1} parent=11 // pred_check
          %p243 = pneg %p117
        $region26: #{tpu_custom_call.1} parent=11 // pred_check_branch
          %245 = sbr.rel (%p243) target = $region28
        $region27: #{tpu_custom_call.1} parent=11 // pred_region
          %s247 = ssub.s32 2048, 2048
          %248 = vsyncadd [#allocation6], %s247
          %s249 = sshll.u32 [#allocation5], 4
          %s250 = int_to_ptr.vmem [resolvable:$true] %s249
          %255 = dma.hbm_to_vmem [thread:$0]  %s3, 2048, %s250, [#allocation6], 64, 64, 4
        $region28: #{tpu_custom_call.1} parent=11 // pred_fallthru
          _
        // Predicated region
        $region29: #{tpu_custom_call.1} parent=11 // pred_check
          %p256 = pneg %p138
        $region30: #{tpu_custom_call.1} parent=11 // pred_check_branch
          %258 = sbr.rel (%p256) target = $region32
        $region31: #{tpu_custom_call.1} parent=11 // pred_region
          _
        $region32: #{tpu_custom_call.1} parent=11 // pred_fallthru
          _
        // Predicated region
        $region33: #{tpu_custom_call.1} parent=11 // pred_check
          %p259 = pneg %p159
        $region34: #{tpu_custom_call.1} parent=11 // pred_check_branch
          %261 = sbr.rel (%p259) target = $region36
        $region35: #{tpu_custom_call.1} parent=11 // pred_region
          %s263 = ssub.s32 2048, 2048
          %264 = vsyncadd [#allocation6], %s263
          %s265 = sshll.u32 [#allocation7], 4
          %s266 = int_to_ptr.vmem [resolvable:$true] %s265
          %271 = dma.hbm_to_vmem [thread:$0]  %s5, 2048, %s266, [#allocation6], 64, 64, 4
        $region36: #{tpu_custom_call.1} parent=11 // pred_fallthru
          _
        // Predicated region
        $region37: #{tpu_custom_call.1} parent=11 // pred_check
          %p272 = pneg %p180
        $region38: #{tpu_custom_call.1} parent=11 // pred_check_branch
          %274 = sbr.rel (%p272) target = $region40
        $region39: #{tpu_custom_call.1} parent=11 // pred_region
          _
        $region40: #{tpu_custom_call.1} parent=11 // pred_fallthru
          _
      $region12: #{tpu_custom_call.1} parent=5 // pred_fallthru
        _
      %p275 = scmp.lt.s32.totalorder %s16, 2
      // Predicated region
      $region41: #{tpu_custom_call.1} parent=5 // pred_check
        %p276 = pneg %p275
      $region42: #{tpu_custom_call.1} parent=5 // pred_check_branch
        %278 = sbr.rel (%p276) target = $region44
      $region43: #{tpu_custom_call.1} parent=5 // pred_region
        _
      $region44: #{tpu_custom_call.1} parent=5 // pred_fallthru
        _
      %p279 = scmp.le.s32.totalorder 1, %s16
      %p280 = scmp.lt.s32.totalorder %s16, 3
      %p281 = pnand %p279, %p280
      %p282 = pneg %p281
      // Predicated region
      $region45: #{tpu_custom_call.1} parent=5 // pred_check
        _
      $region46: #{tpu_custom_call.1} parent=5 // pred_check_branch
        %284 = sbr.rel (%p281) target = $region48
      $region47: #{tpu_custom_call.1} parent=5 // pred_region
        %s285 = ssub.s32 %s16, 1
        // Predicated region
        $region49: #{tpu_custom_call.1} parent=47 // pred_check
          %p286 = pneg %p54
        $region50: #{tpu_custom_call.1} parent=47 // pred_check_branch
          %288 = sbr.rel (%p286) target = $region52
        $region51: #{tpu_custom_call.1} parent=47 // pred_region
          %289 = dma.done [#allocation3], 256
        $region52: #{tpu_custom_call.1} parent=47 // pred_fallthru
          _
        // Predicated region
        $region53: #{tpu_custom_call.1} parent=47 // pred_check
          %p290 = pneg %p117
        $region54: #{tpu_custom_call.1} parent=47 // pred_check_branch
          %292 = sbr.rel (%p290) target = $region56
        $region55: #{tpu_custom_call.1} parent=47 // pred_region
          %293 = dma.done [#allocation6], 2048
        $region56: #{tpu_custom_call.1} parent=47 // pred_fallthru
          _
        // Predicated region
        $region57: #{tpu_custom_call.1} parent=47 // pred_check
          %p294 = pneg %p159
        $region58: #{tpu_custom_call.1} parent=47 // pred_check_branch
          %296 = sbr.rel (%p294) target = $region60
        $region59: #{tpu_custom_call.1} parent=47 // pred_region
          %297 = dma.done [#allocation6], 2048
        $region60: #{tpu_custom_call.1} parent=47 // pred_fallthru
          _
        %p298 = pneg %p54
        %p299 = pneg %p51
        %p300 = pneg %p75
        %p301 = pneg %p72
        %p302 = pneg %p96
        %p303 = pneg %p93
        %p304 = pneg %p117
        %p305 = pneg %p114
        %p306 = pneg %p138
        %p307 = pneg %p135
        %p308 = pneg %p159
        %p309 = pneg %p156
        %p310 = pneg %p180
        %p311 = pneg %p177
        %p312 = pneg %p206
        %p313 = pneg %p203
        %s314 = smul.u32 2, %s25
        %s315 = smul.u32 2, %s25
        %p317 = scmp.eq.s32.totalorder %s26, 0
        // Predicated region
        $region61: #{tpu_custom_call.1} parent=47 // pred_check
          %p318 = pneg %p317
        $region62: #{tpu_custom_call.1} parent=47 // pred_check_branch
          %320 = sbr.rel (%p318) target = $region64
        $region63: #{tpu_custom_call.1} parent=47 // pred_region
          %v321 = vld [vmem:[#allocation2] sm:$0xff]
          %v322 = vld [vmem:[#allocation2 + $0x8] sm:$0xff]
          %323 = vst [vmem:[#allocation8] sm:$0xff] %v321
          %324 = vst [vmem:[#allocation8 + $0x8] sm:$0xff] %v322
        $region64: #{tpu_custom_call.1} parent=47 // pred_fallthru
          _
        %v325 = vld [vmem:[#allocation8] sm:$0xff]
        %v326 = vld [vmem:[#allocation8 + $0x8] sm:$0xff]
        %327 = vadd.xlane.f32.xlu0 %v325
        %v328 = vpop.xlane.xlu0 %327
        %329 = vadd.xlane.f32.xlu0 %v326
        %v330 = vpop.xlane.xlu0 %329
        %v331 = vmul.f32 %v328, 0.03125
        %v332 = vmul.f32 %v330, 0.03125
        %v333 = vsub.f32 %v325, %v331
        %v334 = vsub.f32 %v326, %v332
        %v335 = vlaneseq
        %v336 = vand.u32 %v335, 127
        %vm337 = vcmp.lt.s32.totalorder %v336, 32
        %v338 = vsel %vm337, 1, 0
        %vm339 = vcmp.eq.s32.totalorder %v338, 1
        %v340 = vsel %vm339, %v333, 0.0
        %v341 = vsel %vm339, %v334, 0.0
        %v342 = vmul.f32 %v340, %v340
        %v343 = vmul.f32 %v341, %v341
        %344 = vadd.xlane.f32.xlu0 %v342
        %v345 = vpop.xlane.xlu0 %344
        %346 = vadd.xlane.f32.xlu0 %v343
        %v347 = vpop.xlane.xlu0 %346
        %v348 = vmul.f32 %v345, 0.03125
        %v349 = vmul.f32 %v347, 0.03125
        %v350 = vadd.f32 %v348, 1e-05
        %v351 = vadd.f32 %v349, 1e-05
        %v352 = vrsqrt.pop %v350
        %v353 = vrsqrt.pop %v351
        %v354 = vmul.f32 %v340, %v352
        %v355 = vmul.f32 %v341, %v353
        %s356 = scalar_lea.vmem %s1, %s26
        %v357 = vld [vmem:[%s356] sm:$0x1]
        %v359 = vlaneseq
        %v360 = vshrl.u32 %v359, 7
        %v361 = vsub.s32 0, %v360
        %v362 = vrot.slane %v357, %v361
        %v364 = vmul.f32 %v354, %v362
        %v365 = vmul.f32 %v355, %v362
        %s366 = scalar_lea.vmem %s2, %s26
        %v367 = vld [vmem:[%s366] sm:$0x1]
        %v369 = vlaneseq
        %v370 = vshrl.u32 %v369, 7
        %v371 = vsub.s32 0, %v370
        %v372 = vrot.slane %v367, %v371
        %v374 = vadd.f32 %v364, %v372
        %v375 = vadd.f32 %v365, %v372
        %v376 = vpack.c.bf16 %v375, %v374
        %s377 = smul.u32 %s26, 16
        %s378 = smul.addr %s377, 4
        %s379 = scalar_lea.vmem [#allocation5], %s378
        %v380 = vld [vmem:[%s379] sm:$0xf]
        %v381 = vld [vmem:[%s379 + $0x4] sm:$0xf]
        %v382 = vld [vmem:[%s379 + $0x8] sm:$0xf]
        %v383 = vld [vmem:[%s379 + $0xc] sm:$0xf]
        %v384 = vld [vmem:[%s379 + $0x10] sm:$0xf]
        %v385 = vld [vmem:[%s379 + $0x14] sm:$0xf]
        %v386 = vld [vmem:[%s379 + $0x18] sm:$0xf]
        %v387 = vld [vmem:[%s379 + $0x1c] sm:$0xf]
        %v388 = vld [vmem:[%s379 + $0x20] sm:$0xf]
        %v389 = vld [vmem:[%s379 + $0x24] sm:$0xf]
        %v390 = vld [vmem:[%s379 + $0x28] sm:$0xf]
        %v391 = vld [vmem:[%s379 + $0x2c] sm:$0xf]
        %v392 = vld [vmem:[%s379 + $0x30] sm:$0xf]
        %v393 = vld [vmem:[%s379 + $0x34] sm:$0xf]
        %v394 = vld [vmem:[%s379 + $0x38] sm:$0xf]
        %v395 = vld [vmem:[%s379 + $0x3c] sm:$0xf]
        %s396 = scalar_lea.vmem %s4, %s26
        %v397 = vld [vmem:[%s396] sm:$0x1]
        %v399 = vlaneseq
        %v400 = vshrl.u32 %v399, 7
        %v401 = vsub.s32 0, %v400
        %v402 = vrot.slane %v397, %v401
        %v420 = vunpack.c.l.b16 %v380
        %v421 = vunpack.c.l.b16 %v381
        %v422 = vunpack.c.l.b16 %v382
        %v423 = vunpack.c.l.b16 %v383
        %v424 = vunpack.c.l.b16 %v384
        %v425 = vunpack.c.l.b16 %v385
        %v426 = vunpack.c.l.b16 %v386
        %v427 = vunpack.c.l.b16 %v387
        %v428 = vunpack.c.l.b16 %v388
        %v429 = vunpack.c.l.b16 %v389
        %v430 = vunpack.c.l.b16 %v390
        %v431 = vunpack.c.l.b16 %v391
        %v432 = vunpack.c.l.b16 %v392
        %v433 = vunpack.c.l.b16 %v393
        %v434 = vunpack.c.l.b16 %v394
        %v435 = vunpack.c.l.b16 %v395
        %v436 = vpack.c.b16 %v421, %v420
        %v437 = vpack.c.b16 %v423, %v422
        %v438 = vpack.c.b16 %v425, %v424
        %v439 = vpack.c.b16 %v427, %v426
        %v440 = vpack.c.b16 %v429, %v428
        %v441 = vpack.c.b16 %v431, %v430
        %v442 = vpack.c.b16 %v433, %v432
        %v443 = vpack.c.b16 %v435, %v434
        %452 = vmatprep.subr.bf16.mxu0 0
        %453 = vmatpush1.bf16.msra.mxu0 %v436
        %454 = vmatprep.subr.bf16.mxu0 0
        %455 = vmatpush1.bf16.msra.mxu0 %v437
        %456 = vmatprep.subr.bf16.mxu0 0
        %457 = vmatpush1.bf16.msra.mxu0 %v438
        %458 = vmatprep.subr.bf16.mxu0 0
        %459 = vmatpush1.bf16.msra.mxu0 %v439
        %460 = vmatprep.subr.bf16.mxu0 0
        %461 = vmatpush1.bf16.msra.mxu0 %v440
        %462 = vmatprep.subr.bf16.mxu0 0
        %463 = vmatpush1.bf16.msra.mxu0 %v441
        %464 = vmatprep.subr.bf16.mxu0 0
        %465 = vmatpush1.bf16.msra.mxu0 %v442
        %466 = vmatprep.subr.bf16.mxu0 0
        %467 = vmatpush1.bf16.msra.mxu0 %v443
        %468 = vmatprep.subr.bf16.mxu0 0
        %469 = vmatpush1.bf16.msra.mxu0 0
        %470 = vmatprep.subr.bf16.mxu0 0
        %471 = vmatpush1.bf16.msra.mxu0 0
        %472 = vmatprep.subr.bf16.mxu0 0
        %473 = vmatpush1.bf16.msra.mxu0 0
        %474 = vmatprep.subr.bf16.mxu0 0
        %475 = vmatpush1.bf16.msra.mxu0 0
        %476 = vmatprep.subr.bf16.mxu0 0
        %477 = vmatpush1.bf16.msra.mxu0 0
        %478 = vmatprep.subr.bf16.mxu0 0
        %479 = vmatpush1.bf16.msra.mxu0 0
        %480 = vmatprep.subr.bf16.mxu0 0
        %481 = vmatpush1.bf16.msra.mxu0 0
        %482 = vmatprep.subr.bf16.mxu0 0
        %483 = vmatpush1.bf16.msra.mxu0 0
        %484 = vmatprep.mubr.bf16.mxu0 0
        %485 = vmatmul.mubr.bf16.gmra.mrb[0].mxu0 %v376
        %v486 = vpop.f32.mrb[0].mxu0
        %v487 = vadd.f32 %v402, %v486
        %v488 = vpop.f32.mrb[0].mxu0
        %v489 = vpop.f32.mrb[0].mxu0
        %v490 = vadd.f32 %v402, %v489
        %v491 = vpop.f32.mrb[0].mxu0
        %492 = vdwg.mxu0
        %v493 = vmul.f32 %v487, %v487
        %v494 = vmul.f32 %v490, %v490
        %v495 = vmul.f32 %v487, %v493
        %v496 = vmul.f32 %v490, %v494
        %v497 = vmul.f32 %v495, 0.044715
        %v498 = vmul.f32 %v496, 0.044715
        %v499 = vadd.f32 %v487, %v497
        %v500 = vadd.f32 %v490, %v498
        %v501 = vmul.f32 %v499, 0.7978846
        %v502 = vmul.f32 %v500, 0.7978846
        %v503 = vtanh.pop %v501
        %v504 = vtanh.pop %v502
        %v505 = vadd.f32 %v503, 1.0
        %v506 = vadd.f32 %v504, 1.0
        %v507 = vmul.f32 %v505, 0.5
        %v508 = vmul.f32 %v506, 0.5
        %v509 = vmul.f32 %v487, %v507
        %v510 = vmul.f32 %v490, %v508
        %v511 = vpack.c.bf16 %v510, %v509
        %s512 = smul.addr %s377, 4
        %s513 = scalar_lea.vmem [#allocation7], %s512
        %v514 = vld [vmem:[%s513] sm:$0xf]
        %v515 = vld [vmem:[%s513 + $0x4] sm:$0xf]
        %v516 = vld [vmem:[%s513 + $0x8] sm:$0xf]
        %v517 = vld [vmem:[%s513 + $0xc] sm:$0xf]
        %v518 = vld [vmem:[%s513 + $0x10] sm:$0xf]
        %v519 = vld [vmem:[%s513 + $0x14] sm:$0xf]
        %v520 = vld [vmem:[%s513 + $0x18] sm:$0xf]
        %v521 = vld [vmem:[%s513 + $0x1c] sm:$0xf]
        %v522 = vld [vmem:[%s513 + $0x20] sm:$0xf]
        %v523 = vld [vmem:[%s513 + $0x24] sm:$0xf]
        %v524 = vld [vmem:[%s513 + $0x28] sm:$0xf]
        %v525 = vld [vmem:[%s513 + $0x2c] sm:$0xf]
        %v526 = vld [vmem:[%s513 + $0x30] sm:$0xf]
        %v527 = vld [vmem:[%s513 + $0x34] sm:$0xf]
        %v528 = vld [vmem:[%s513 + $0x38] sm:$0xf]
        %v529 = vld [vmem:[%s513 + $0x3c] sm:$0xf]
        %s530 = scalar_lea.vmem %s6, %s26
        %v531 = vld [vmem:[%s530] sm:$0x1]
        %v533 = vlaneseq
        %v534 = vshrl.u32 %v533, 7
        %v535 = vsub.s32 0, %v534
        %v536 = vrot.slane %v531, %v535
        %v554 = vunpack.c.l.b16 %v514
        %v555 = vunpack.c.l.b16 %v515
        %v556 = vunpack.c.l.b16 %v516
        %v557 = vunpack.c.l.b16 %v517
        %v558 = vunpack.c.l.b16 %v518
        %v559 = vunpack.c.l.b16 %v519
        %v560 = vunpack.c.l.b16 %v520
        %v561 = vunpack.c.l.b16 %v521
        %v562 = vunpack.c.l.b16 %v522
        %v563 = vunpack.c.l.b16 %v523
        %v564 = vunpack.c.l.b16 %v524
        %v565 = vunpack.c.l.b16 %v525
        %v566 = vunpack.c.l.b16 %v526
        %v567 = vunpack.c.l.b16 %v527
        %v568 = vunpack.c.l.b16 %v528
        %v569 = vunpack.c.l.b16 %v529
        %v570 = vpack.c.b16 %v555, %v554
        %v571 = vpack.c.b16 %v557, %v556
        %v572 = vpack.c.b16 %v559, %v558
        %v573 = vpack.c.b16 %v561, %v560
        %v574 = vpack.c.b16 %v563, %v562
        %v575 = vpack.c.b16 %v565, %v564
        %v576 = vpack.c.b16 %v567, %v566
        %v577 = vpack.c.b16 %v569, %v568
        %586 = vmatprep.subr.bf16.mxu0 0
        %587 = vmatpush1.bf16.msra.mxu0 %v570
        %588 = vmatprep.subr.bf16.mxu0 0
        %589 = vmatpush1.bf16.msra.mxu0 %v571
        %590 = vmatprep.subr.bf16.mxu0 0
        %591 = vmatpush1.bf16.msra.mxu0 %v572
        %592 = vmatprep.subr.bf16.mxu0 0
        %593 = vmatpush1.bf16.msra.mxu0 %v573
        %594 = vmatprep.subr.bf16.mxu0 0
        %595 = vmatpush1.bf16.msra.mxu0 %v574
        %596 = vmatprep.subr.bf16.mxu0 0
        %597 = vmatpush1.bf16.msra.mxu0 %v575
        %598 = vmatprep.subr.bf16.mxu0 0
        %599 = vmatpush1.bf16.msra.mxu0 %v576
        %600 = vmatprep.subr.bf16.mxu0 0
        %601 = vmatpush1.bf16.msra.mxu0 %v577
        %602 = vmatprep.subr.bf16.mxu0 0
        %603 = vmatpush1.bf16.msra.mxu0 0
        %604 = vmatprep.subr.bf16.mxu0 0
        %605 = vmatpush1.bf16.msra.mxu0 0
        %606 = vmatprep.subr.bf16.mxu0 0
        %607 = vmatpush1.bf16.msra.mxu0 0
        %608 = vmatprep.subr.bf16.mxu0 0
        %609 = vmatpush1.bf16.msra.mxu0 0
        %610 = vmatprep.subr.bf16.mxu0 0
        %611 = vmatpush1.bf16.msra.mxu0 0
        %612 = vmatprep.subr.bf16.mxu0 0
        %613 = vmatpush1.bf16.msra.mxu0 0
        %614 = vmatprep.subr.bf16.mxu0 0
        %615 = vmatpush1.bf16.msra.mxu0 0
        %616 = vmatprep.subr.bf16.mxu0 0
        %617 = vmatpush1.bf16.msra.mxu0 0
        %618 = vmatprep.mubr.bf16.mxu0 0
        %619 = vmatmul.mubr.bf16.gmra.mrb[0].mxu0 %v511
        %v620 = vpop.f32.mrb[0].mxu0
        %v621 = vadd.f32 %v536, %v620
        %v622 = vpop.f32.mrb[0].mxu0
        %v623 = vpop.f32.mrb[0].mxu0
        %v624 = vadd.f32 %v536, %v623
        %v625 = vpop.f32.mrb[0].mxu0
        %626 = vdwg.mxu0
        %v627 = vadd.f32 %v325, %v621
        %v628 = vadd.f32 %v326, %v624
        %629 = vst [vmem:[#allocation8] sm:$0xff] %v627
        %630 = vst [vmem:[#allocation8 + $0x8] sm:$0xff] %v628
        // Predicated region
        $region65: #{tpu_custom_call.1} parent=47 // pred_check
          %p631 = pneg %p203
        $region66: #{tpu_custom_call.1} parent=47 // pred_check_branch
          %633 = sbr.rel (%p631) target = $region68
        $region67: #{tpu_custom_call.1} parent=47 // pred_region
          %s634 = smul.u32 2, %s25
          %s636 = ssub.s32 256, 256
          %637 = vsyncadd [#allocation4], %s636
          %s638 = smul.addr %s634, 128
          %s639 = scalar_lea.hbm %s7, %s638
          %s640 = sshll.u32 [#allocation8], 4
          %s641 = int_to_ptr.vmem [resolvable:$true] %s640
          %646 = dma.vmem_to_hbm [thread:$0]  %s641, 256, %s639, [#allocation4], 128, 128, 8
        $region68: #{tpu_custom_call.1} parent=47 // pred_fallthru
          _
        // Predicated region
        $region69: #{tpu_custom_call.1} parent=47 // pred_check
          %p647 = pneg %p203
        $region70: #{tpu_custom_call.1} parent=47 // pred_check_branch
          %649 = sbr.rel (%p647) target = $region72
        $region71: #{tpu_custom_call.1} parent=47 // pred_region
          %650 = dma.done [#allocation4], 256
        $region72: #{tpu_custom_call.1} parent=47 // pred_fallthru
          _
      $region48: #{tpu_custom_call.1} parent=5 // pred_fallthru
        _
      %p651 = scmp.le.s32.totalorder 2, %s16
      // Predicated region
      $region73: #{tpu_custom_call.1} parent=5 // pred_check
        %p652 = pneg %p651
      $region74: #{tpu_custom_call.1} parent=5 // pred_check_branch
        %654 = sbr.rel (%p652) target = $region76
      $region75: #{tpu_custom_call.1} parent=5 // pred_region
        %s655 = ssub.s32 %s16, 2
      $region76: #{tpu_custom_call.1} parent=5 // pred_fallthru
        _
    $region6: #{tpu_custom_call.1} parent=1 // loop_footer
      %s20 = sadd.s32 1, %s16
    $region7: #{tpu_custom_call.1} parent=1 // loop_footer_branch
      %15 = sbr.rel target = $region3
    $region8: #{tpu_custom_call.1} parent=1 // loop_exit
      _
    %656 = vsyncpa [#allocation3], 1
    %s657 = scalar_lea.sflag [#allocation3], 1
    %658 = vsyncpa %s657, 1
    %659 = vsyncpa [#allocation6], 1
    %660 = vsyncpa [#allocation4], 1
    %s661 = scalar_lea.sflag [#allocation4], 1
    %662 = vsyncpa %s661, 1

</llo_original>
